<compile_context>
chip_gen: v5e
topology: v5e:2x2
jax: 0.10.0
libtpu: 0.0.40
codegen_flags: <defaults>
</compile_context>

<pallas_src>
import jax
import jax.numpy as jnp
from jax import lax
from jax.experimental import pallas as pl
from jax.experimental.pallas import tpu as pltpu


def _bt_loss_partial_kernel(x_ref, o_ref):
    """x_ref: [TILE_N, D] block.  o_ref: (8, 128) per-tile partial (value at [0,0])."""
    x_raw = x_ref[...]
    d = x_raw.shape[1]

    # Linear row sums on the MXU (idle otherwise).  bf16 inputs feed the MXU
    # directly; f32 inputs use the MXU's f32 path.
    ones_in = jnp.ones((d, 1), dtype=x_raw.dtype)
    x_sum = jnp.dot(x_raw, ones_in, preferred_element_type=jnp.float32)       # [T,1]

    # Squared row sums: square on the VPU in f32, reduce over lanes on the MXU.
    xf = x_raw.astype(jnp.float32)
    ones_f32 = jnp.ones((d, 1), dtype=jnp.float32)
    sq_sum = jnp.dot(xf * xf, ones_f32, preferred_element_type=jnp.float32)   # [T,1]

    # F.normalize(p=2, dim=1, eps=1e-12): clamp the *squared* norm at 1e-24.
    inv = lax.rsqrt(jnp.maximum(sq_sum, 1e-24))                               # EUP
    row_sum = x_sum * inv                     # sum_d f[n, d]
    trace_term = sq_sum * (inv * inv)         # sum_d f[n, d]^2  (exactly 0 for padded rows)

    # Off-diagonal Gram contribution of this row block.
    partial = jnp.sum(row_sum * row_sum - trace_term)

    # Lane-dense (8, 128) output block; only element [0,0] carries the partial.
    ri = lax.broadcasted_iota(jnp.int32, (8, 128), 0)
    ci = lax.broadcasted_iota(jnp.int32, (8, 128), 1)
    onehot = jnp.logical_and(ri == 0, ci == 0).astype(jnp.float32)
    o_ref[...] = onehot * partial


def _round_up(x, m):
    return ((x + m - 1) // m) * m


def _choose_tile_n(n, d, itemsize):
    """Rows per tile, budgeted against the f32 working set (not just input bytes)."""
    d_pad = _round_up(max(d, 1), 128)               # lane padding of the VMEM layout
    # 2x double-buffered input + ~2x [T, D] f32 temporaries (cast + square).
    bytes_per_row = d_pad * (2 * itemsize + 8)
    budget = 32 << 20                               # ~32 MiB working set
    tile = budget // bytes_per_row
    tile = min(tile, _round_up(n, 8), 32768)
    return max(8, (int(tile) // 8) * 8)


def barlow_twin_loss(features, labels=None, loss_weight=1.0, tile_n=None):
    """features: [N, D] float array.  labels unused (matches the PyTorch forward)."""
    del labels  # unused by the forward pass
    n, d = features.shape
    itemsize = jnp.dtype(features.dtype).itemsize

    if tile_n is None:
        tile_n = _choose_tile_n(n, d, itemsize)
    tile_n = max(8, (int(tile_n) // 8) * 8)

    n_pad = _round_up(n, tile_n)
    x = features
    if n_pad != n:
        # Zero rows are exactly neutral for this loss (see kernel comment).
        x = jnp.pad(x, ((0, n_pad - n), (0, 0)))
    num_tiles = n_pad // tile_n

    # Exact compile-time constant (matches PyTorch's D*D - D + 1e-6).
    inv_den = 1.0 / (d * d - d + 1e-6)

    partials = pl.pallas_call(
        _bt_loss_partial_kernel,
        out_shape=jax.ShapeDtypeStruct((num_tiles * 8, 128), jnp.float32),
        grid_spec=pltpu.PrefetchScalarGridSpec(
            num_scalar_prefetch=0,
            grid=(num_tiles,),
            in_specs=[pl.BlockSpec((tile_n, d), lambda i: (i, 0))],
            out_specs=pl.BlockSpec((8, 128), lambda i: (i, 0)),
        ),
        compiler_params=pltpu.CompilerParams(
            # "parallel": independent per-tile partials -> both v7x TCs share the
            # row stream; measured-neutral on single-core v5e/v6e.
            dimension_semantics=("parallel",),
            vmem_limit_bytes=48 * 1024 * 1024,
        ),
    )(x)

    # Tiny final reduction + scale outside the kernel (traced loss_weight OK).
    return loss_weight * (jnp.sum(partials) * inv_den)


def _reference_loss(features, loss_weight=1.0):
    """Pure-JAX mirror of the PyTorch forward (explicit Gram + mask)."""
    f = features.astype(jnp.float32)
    norm = jnp.maximum(jnp.linalg.norm(f, axis=1, keepdims=True), 1e-12)
    fn = f / norm
    gram = fn.T @ fn
    dd = gram.shape[0]
    mask_neg = 1.0 - jnp.eye(dd, dtype=jnp.float32)
    return loss_weight * jnp.sum(mask_neg * gram) / (jnp.sum(mask_neg) + 1e-6)


if __name__ == "__main__":
    key = jax.random.PRNGKey(0)
    k1, k2, k3 = jax.random.split(key, 3)

    # Case 1: multi-tile (grid of 2 row tiles) -> exercises per-tile partials + wrapper sum.
    N1, D1 = 256, 128
    feats1 = jax.random.normal(k1, (N1, D1), dtype=jnp.float32)
    labels1 = jax.random.randint(k2, (N1,), 0, 10)  # unused by the loss
    loss1 = jax.block_until_ready(
        barlow_twin_loss(feats1, labels1, loss_weight=1.0, tile_n=128))
    ref1 = _reference_loss(feats1, loss_weight=1.0)
    assert jnp.allclose(loss1, ref1, atol=5e-5, rtol=1e-3), (loss1, ref1)

    # Case 2: ragged N (zero-row padding), non-128 D, loss_weight != 1, auto tile.
    N2, D2 = 37, 96
    feats2 = jax.random.normal(k3, (N2, D2), dtype=jnp.float32)
    loss2 = jax.block_until_ready(
        barlow_twin_loss(feats2, None, loss_weight=0.5))
    ref2 = _reference_loss(feats2, loss_weight=0.5)
    assert jnp.allclose(loss2, ref2, atol=5e-5, rtol=1e-3), (loss2, ref2)

    print("KERNEL_OK")
</pallas_src>

<mosaic_0001>
module attributes {stable_mosaic.version = 11 : i64} {
  func.func @_bt_loss_partial_kernel(%arg0: i32, %arg1: memref<128x128xf32, #tpu.memory_space<vmem>>, %arg2: memref<8x128xf32, #tpu.memory_space<vmem>>) attributes {dimension_semantics = [#tpu.dimension_semantics<parallel>], iteration_bounds = array<i64: 2>, scalar_prefetch = 0 : i64, scratch_operands = 0 : i64, tpu.core_type = #tpu.core_type<tc>, window_params = [{transform_indices = @transform_0, window_bounds = array<i64: 128, 128>}, {transform_indices = @transform_1, window_bounds = array<i64: 8, 128>}]} {
    %c0 = arith.constant 0 : index
    %c0_0 = arith.constant 0 : index
    %0 = vector.load %arg1[%c0, %c0_0] : memref<128x128xf32, #tpu.memory_space<vmem>>, vector<128x128xf32>
    %cst = arith.constant 1.000000e+00 : f32
    %1 = vector.broadcast %cst : f32 to vector<128x1xf32>
    %cst_1 = arith.constant dense<0.000000e+00> : vector<128x1xf32>
    %2 = tpu.matmul %0, %1, %cst_1 {dimension_numbers = #tpu.dot_dimension_numbers<[1], [0], [0], [1], [0, 0, 1, 1], [], []>} : vector<128x128xf32>, vector<128x1xf32>, vector<128x1xf32> -> vector<128x1xf32>
    %cst_2 = arith.constant 1.000000e+00 : f32
    %3 = vector.broadcast %cst_2 : f32 to vector<128x1xf32>
    %4 = arith.mulf %0, %0 : vector<128x128xf32>
    %cst_3 = arith.constant dense<0.000000e+00> : vector<128x1xf32>
    %5 = tpu.matmul %4, %3, %cst_3 {dimension_numbers = #tpu.dot_dimension_numbers<[1], [0], [0], [1], [0, 0, 1, 1], [], []>} : vector<128x128xf32>, vector<128x1xf32>, vector<128x1xf32> -> vector<128x1xf32>
    %cst_4 = arith.constant 1.000000e-24 : f32
    %6 = vector.broadcast %cst_4 : f32 to vector<128x1xf32>
    %7 = arith.maximumf %5, %6 : vector<128x1xf32>
    %8 = math.rsqrt %7 : vector<128x1xf32>
    %9 = arith.mulf %2, %8 : vector<128x1xf32>
    %10 = arith.mulf %8, %8 : vector<128x1xf32>
    %11 = arith.mulf %5, %10 : vector<128x1xf32>
    %12 = arith.mulf %9, %9 : vector<128x1xf32>
    %13 = arith.subf %12, %11 : vector<128x1xf32>
    %14 = vector.shape_cast %13 : vector<128x1xf32> to vector<1x128x1xf32>
    %cst_5 = arith.constant dense<0.000000e+00> : vector<1xf32>
    %15 = vector.multi_reduction <add>, %14, %cst_5 [1, 2] : vector<1x128x1xf32> to vector<1xf32>
    %16 = vector.shape_cast %15 : vector<1xf32> to vector<1x1x1xf32>
    %17 = vector.extract %16[0, 0, 0] : f32 from vector<1x1x1xf32>
    %18 = tpu.iota {dimensions = array<i32: 0>} : vector<8x128xi32>
    %19 = tpu.iota {dimensions = array<i32: 1>} : vector<8x128xi32>
    %c0_i32 = arith.constant 0 : i32
    %20 = vector.broadcast %c0_i32 : i32 to vector<8x128xi32>
    %21 = arith.cmpi eq, %18, %20 : vector<8x128xi32>
    %c0_i32_6 = arith.constant 0 : i32
    %22 = vector.broadcast %c0_i32_6 : i32 to vector<8x128xi32>
    %23 = arith.cmpi eq, %19, %22 : vector<8x128xi32>
    %24 = arith.andi %21, %23 : vector<8x128xi1>
    %25 = arith.extui %24 : vector<8x128xi1> to vector<8x128xi32>
    %26 = arith.sitofp %25 : vector<8x128xi32> to vector<8x128xf32>
    %27 = vector.broadcast %17 : f32 to vector<8x128xf32>
    %28 = arith.mulf %26, %27 : vector<8x128xf32>
    %c0_7 = arith.constant 0 : index
    %c0_8 = arith.constant 0 : index
    %29 = vector.load %arg2[%c0_7, %c0_8] : memref<8x128xf32, #tpu.memory_space<vmem>>, vector<8x128xf32>
    tpu.vector_store %arg2[%c0_7, %c0_8], %28 {strides = array<i32>} : memref<8x128xf32, #tpu.memory_space<vmem>>, vector<8x128xf32>,
    return
  }
  func.func @transform_0(%arg0: i32) -> (i32, i32) {
    %c0_i32 = arith.constant 0 : i32
    %c0_i32_0 = arith.constant 0 : i32
    return %arg0, %c0_i32 : i32, i32
  }
  func.func @transform_1(%arg0: i32) -> (i32, i32) {
    %c0_i32 = arith.constant 0 : i32
    %c0_i32_0 = arith.constant 0 : i32
    return %arg0, %c0_i32 : i32, i32
  }
}

</mosaic_0001>

<llo_original>
// kernel: tpu_custom_call.1
$region0: #{tpu_custom_call.1}
  #allocation0 [shape = 'u32[]', space=smem, size = 0x4, offset = 0x4, fixed_abs, tag = 'smem constant byte address 0x4 - core index']
  #allocation1 [shape = 'u32[72,128]{1,0:T(1,128)}', space=vmem, size = 0x9000, scoped, tag = 'internal scratch']
  %s0 = inlined_call_operand.hbm [shape: f32[256,128], index: 0, kind: input, shape index: {}]
  %s1 = inlined_call_operand.hbm [shape: f32[16,128], index: 1, kind: output, shape index: {}]
  %s2 = sld [smem:[#allocation0]]
  $region41: #{tpu_custom_call.1} parent=0
    _
  %s4 = ssub.s32 1, %s2
  %s5 = scalar_select 0, %s4, %s2
  $region1: #{tpu_custom_call.1} parent=0
    #allocation2 [shape = 'u8[131072]{0}', space=vmem, size = 0x20000, scoped, tag = 'input window, operand 0']
    #allocation3 [shape = 's32[2]{0}', space=sflag, size = 0x8, scoped, tag = 'scoped memory for tpu_custom_call.1']
    #allocation4 [shape = 's32[2]{0}', space=sflag, size = 0x8, scoped, tag = 'scoped memory for tpu_custom_call.1']
    #allocation5 [shape = 'u8[8192]{0}', space=vmem, size = 0x2000, scoped, tag = 'output window, operand 0']
    %6 = vsyncpa [#allocation3], 0
    %s7 = scalar_lea.sflag [#allocation3], 1
    %8 = vsyncpa %s7, 0
    %9 = vsyncpa [#allocation4], 0
    %s10 = scalar_lea.sflag [#allocation4], 1
    %11 = vsyncpa %s10, 0
    loop: start=0, step=1, limit=4
    $region2: #{tpu_custom_call.1} parent=1 // loop_pre_header
      _
    $region3: #{tpu_custom_call.1} parent=1 // loop_header
      %s13 = sphi 0, %s17
      %p14 = scmp.ge.s32.totalorder %s13, 4
      %s23 = sphi 0, %s25
      %s26 = sphi 0, %s23
      %s27 = sphi 0, %s26
      %s43 = sphi 0, %s27
      %s49 = sphi 0, %s51
      %s52 = sphi 0, %s49
      %s53 = sphi 0, %s52
      %s69 = sphi 0, %s53
    $region4: #{tpu_custom_call.1} parent=1 // loop_header_branch
      %16 = sbr.rel (%p14) target = $region8
    $region5: #{tpu_custom_call.1} parent=1 // loop_body
      %s18 = ssub.s32 %s13, 1
      %s19 = ssub.s32 %s13, 2
      %s20 = sadd.s32 %s13, 1
      %s21 = ssub.s32 %s13, %s20
      %p22 = scmp.eq.s32.totalorder %s21, 0
      %s24 = sadd.s32 %s23, 1
      %s25 = scalar_select %p22, %s23, %s24
      %p28 = pneg %p22
      %p29 = scmp.eq.s32.totalorder %s13, 1
      %p30 = por %p28, %p29
      %p31 = scmp.ne.s32.totalorder %s23, %s26
      %p32 = scmp.eq.s32.totalorder %s13, 0
      %p33 = por %p31, %p32
      %p34 = scmp.ne.s32.totalorder %s23, %s26
      %p35 = scmp.eq.s32.totalorder %s18, 1
      %p36 = por %p34, %p35
      %p37 = scmp.ne.s32.totalorder %s26, %s27
      %p38 = scmp.eq.s32.totalorder %s18, 0
      %p39 = por %p37, %p38
      %p40 = scmp.ne.s32.totalorder %s26, %s27
      %p41 = scmp.eq.s32.totalorder %s19, 1
      %p42 = por %p40, %p41
      %p44 = scmp.ne.s32.totalorder %s27, %s43
      %p45 = scmp.eq.s32.totalorder %s19, 0
      %p46 = por %p44, %p45
      %s47 = ssub.s32 %s13, %s20
      %p48 = scmp.eq.s32.totalorder %s47, 0
      %s50 = sadd.s32 %s49, 1
      %s51 = scalar_select %p48, %s49, %s50
      %p54 = pneg %p48
      %p55 = scmp.eq.s32.totalorder %s13, 1
      %p56 = por %p54, %p55
      %p57 = scmp.ne.s32.totalorder %s49, %s52
      %p58 = scmp.eq.s32.totalorder %s13, 0
      %p59 = por %p57, %p58
      %p60 = scmp.ne.s32.totalorder %s49, %s52
      %p61 = scmp.eq.s32.totalorder %s18, 1
      %p62 = por %p60, %p61
      %p63 = scmp.ne.s32.totalorder %s52, %s53
      %p64 = scmp.eq.s32.totalorder %s18, 0
      %p65 = por %p63, %p64
      %p66 = scmp.ne.s32.totalorder %s52, %s53
      %p67 = scmp.eq.s32.totalorder %s19, 1
      %p68 = por %p66, %p67
      %p70 = scmp.ne.s32.totalorder %s53, %s69
      %p71 = scmp.eq.s32.totalorder %s19, 0
      %p72 = por %p70, %p71
      %p73 = scmp.le.s32.totalorder 1, %s13
      %p74 = scmp.lt.s32.totalorder %s13, 3
      %p75 = pnand %p73, %p74
      %p76 = pneg %p75
      // Predicated region
      $region9: #{tpu_custom_call.1} parent=5 // pred_check
        _
      $region10: #{tpu_custom_call.1} parent=5 // pred_check_branch
        %78 = sbr.rel (%p75) target = $region12
      $region11: #{tpu_custom_call.1} parent=5 // pred_region
        %s79 = ssub.s32 %s13, 1
      $region12: #{tpu_custom_call.1} parent=5 // pred_fallthru
        _
      %p80 = scmp.lt.s32.totalorder %s13, 2
      // Predicated region
      $region13: #{tpu_custom_call.1} parent=5 // pred_check
        %p81 = pneg %p80
      $region14: #{tpu_custom_call.1} parent=5 // pred_check_branch
        %83 = sbr.rel (%p81) target = $region16
      $region15: #{tpu_custom_call.1} parent=5 // pred_region
        // Predicated region
        $region17: #{tpu_custom_call.1} parent=15 // pred_check
          %p84 = pneg %p33
        $region18: #{tpu_custom_call.1} parent=15 // pred_check_branch
          %86 = sbr.rel (%p84) target = $region20
        $region19: #{tpu_custom_call.1} parent=15 // pred_region
          %s87 = sand.u32 %s23, 1
          %s88 = scalar_lea.sflag [#allocation3], %s87
          %s89 = sand.u32 %s23, 1
          %s90 = smul.addr %s89, 128
          %s91 = scalar_lea.vmem [#allocation2], %s90
          %s92 = smul.u32 16, %s13
          %94 = vsyncadd %s88, 0
          %s95 = smul.addr %s92, 8
          %s96 = scalar_lea.hbm %s0, %s95
          %s97 = sshll.u32 %s96, 4
          %s98 = int_to_ptr.hbm [resolvable:$true] %s97
          %s99 = sshll.u32 %s91, 4
          %s100 = int_to_ptr.vmem [resolvable:$true] %s99
          %105 = dma.hbm_to_vmem [thread:$0]  %s98, 2048, %s100, %s88, 128, 128, 8
        $region20: #{tpu_custom_call.1} parent=15 // pred_fallthru
          _
      $region16: #{tpu_custom_call.1} parent=5 // pred_fallthru
        _
      %p106 = scmp.le.s32.totalorder 1, %s13
      %p107 = scmp.lt.s32.totalorder %s13, 3
      %p108 = pnand %p106, %p107
      %p109 = pneg %p108
      // Predicated region
      $region21: #{tpu_custom_call.1} parent=5 // pred_check
        _
      $region22: #{tpu_custom_call.1} parent=5 // pred_check_branch
        %111 = sbr.rel (%p108) target = $region24
      $region23: #{tpu_custom_call.1} parent=5 // pred_region
        %s112 = ssub.s32 %s13, 1
        %s113 = sand.u32 %s26, 1
        %s114 = scalar_lea.sflag [#allocation3], %s113
        %s115 = sand.u32 %s26, 1
        %s116 = smul.addr %s115, 128
        %s117 = scalar_lea.vmem [#allocation2], %s116
        // Predicated region
        $region25: #{tpu_custom_call.1} parent=23 // pred_check
          %p118 = pneg %p39
        $region26: #{tpu_custom_call.1} parent=23 // pred_check_branch
          %120 = sbr.rel (%p118) target = $region28
        $region27: #{tpu_custom_call.1} parent=23 // pred_region
          %122 = dma.done %s114, 2048
        $region28: #{tpu_custom_call.1} parent=23 // pred_fallthru
          _
        %s123 = sand.u32 %s26, 1
        %s124 = scalar_lea.sflag [#allocation3], %s123
        %s125 = sand.u32 %s26, 1
        %s126 = smul.addr %s125, 128
        %s127 = scalar_lea.vmem [#allocation2], %s126
        %p128 = pneg %p39
        %p129 = pneg %p36
        %p130 = pneg %p65
        %p131 = pneg %p62
        %s132 = sand.u32 %s52, 1
        %s133 = scalar_lea.sflag [#allocation4], %s132
        %s134 = sand.u32 %s52, 1
        %s135 = smul.addr %s134, 8
        %s136 = scalar_lea.vmem [#allocation5], %s135
        %s137 = smul.u32 16, %s18
        %v138 = vld [vmem:[%s117] sm:$0xff]
        %v139 = vld [vmem:[%s117 + $0x8] sm:$0xff]
        %v140 = vld [vmem:[%s117 + $0x10] sm:$0xff]
        %v141 = vld [vmem:[%s117 + $0x18] sm:$0xff]
        %v142 = vld [vmem:[%s117 + $0x20] sm:$0xff]
        %v143 = vld [vmem:[%s117 + $0x28] sm:$0xff]
        %v144 = vld [vmem:[%s117 + $0x30] sm:$0xff]
        %v145 = vld [vmem:[%s117 + $0x38] sm:$0xff]
        %v146 = vld [vmem:[%s117 + $0x40] sm:$0xff]
        %v147 = vld [vmem:[%s117 + $0x48] sm:$0xff]
        %v148 = vld [vmem:[%s117 + $0x50] sm:$0xff]
        %v149 = vld [vmem:[%s117 + $0x58] sm:$0xff]
        %v150 = vld [vmem:[%s117 + $0x60] sm:$0xff]
        %v151 = vld [vmem:[%s117 + $0x68] sm:$0xff]
        %v152 = vld [vmem:[%s117 + $0x70] sm:$0xff]
        %v153 = vld [vmem:[%s117 + $0x78] sm:$0xff]
        %154 = vmatpush.msra.mxu0 1.0
        %155 = vmatpush.msra.mxu0 1.0
        %156 = vmatpush.msra.mxu0 1.0
        %157 = vmatpush.msra.mxu0 1.0
        %158 = vmatpush.msra.mxu0 1.0
        %159 = vmatpush.msra.mxu0 1.0
        %160 = vmatpush.msra.mxu0 1.0
        %161 = vmatpush.msra.mxu0 1.0
        %162 = vmatpush.msra.mxu0 1.0
        %163 = vmatpush.msra.mxu0 1.0
        %164 = vmatpush.msra.mxu0 1.0
        %165 = vmatpush.msra.mxu0 1.0
        %166 = vmatpush.msra.mxu0 1.0
        %167 = vmatpush.msra.mxu0 1.0
        %168 = vmatpush.msra.mxu0 1.0
        %169 = vmatpush.msra.mxu0 1.0
        %170 = vmatmul.f32.gmra.mxu0 %v138
        %v171 = vpop.f32.mrf.mxu0
        %v172 = vadd.f32 0.0, %v171
        %173 = vmatmul.f32.gmra.mxu0 %v139
        %v174 = vpop.f32.mrf.mxu0
        %v175 = vadd.f32 0.0, %v174
        %176 = vmatmul.f32.gmra.mxu0 %v140
        %v177 = vpop.f32.mrf.mxu0
        %v178 = vadd.f32 0.0, %v177
        %179 = vmatmul.f32.gmra.mxu0 %v141
        %v180 = vpop.f32.mrf.mxu0
        %v181 = vadd.f32 0.0, %v180
        %182 = vmatmul.f32.gmra.mxu0 %v142
        %v183 = vpop.f32.mrf.mxu0
        %v184 = vadd.f32 0.0, %v183
        %185 = vmatmul.f32.gmra.mxu0 %v143
        %v186 = vpop.f32.mrf.mxu0
        %v187 = vadd.f32 0.0, %v186
        %188 = vmatmul.f32.gmra.mxu0 %v144
        %v189 = vpop.f32.mrf.mxu0
        %v190 = vadd.f32 0.0, %v189
        %191 = vmatmul.f32.gmra.mxu0 %v145
        %v192 = vpop.f32.mrf.mxu0
        %v193 = vadd.f32 0.0, %v192
        %194 = vmatmul.f32.gmra.mxu0 %v146
        %v195 = vpop.f32.mrf.mxu0
        %v196 = vadd.f32 0.0, %v195
        %197 = vmatmul.f32.gmra.mxu0 %v147
        %v198 = vpop.f32.mrf.mxu0
        %v199 = vadd.f32 0.0, %v198
        %200 = vmatmul.f32.gmra.mxu0 %v148
        %v201 = vpop.f32.mrf.mxu0
        %v202 = vadd.f32 0.0, %v201
        %203 = vmatmul.f32.gmra.mxu0 %v149
        %v204 = vpop.f32.mrf.mxu0
        %v205 = vadd.f32 0.0, %v204
        %206 = vmatmul.f32.gmra.mxu0 %v150
        %v207 = vpop.f32.mrf.mxu0
        %v208 = vadd.f32 0.0, %v207
        %209 = vmatmul.f32.gmra.mxu0 %v151
        %v210 = vpop.f32.mrf.mxu0
        %v211 = vadd.f32 0.0, %v210
        %212 = vmatmul.f32.gmra.mxu0 %v152
        %v213 = vpop.f32.mrf.mxu0
        %v214 = vadd.f32 0.0, %v213
        %215 = vmatmul.f32.gmra.mxu0 %v153
        %v216 = vpop.f32.mrf.mxu0
        %v217 = vadd.f32 0.0, %v216
        %218 = vdwg.mxu0
        %v219 = vmul.f32 %v138, %v138
        %v220 = vmul.f32 %v139, %v139
        %v221 = vmul.f32 %v140, %v140
        %v222 = vmul.f32 %v141, %v141
        %v223 = vmul.f32 %v142, %v142
        %v224 = vmul.f32 %v143, %v143
        %v225 = vmul.f32 %v144, %v144
        %v226 = vmul.f32 %v145, %v145
        %v227 = vmul.f32 %v146, %v146
        %v228 = vmul.f32 %v147, %v147
        %v229 = vmul.f32 %v148, %v148
        %v230 = vmul.f32 %v149, %v149
        %v231 = vmul.f32 %v150, %v150
        %v232 = vmul.f32 %v151, %v151
        %v233 = vmul.f32 %v152, %v152
        %v234 = vmul.f32 %v153, %v153
        %235 = vmatpush.msra.mxu0 1.0
        %236 = vmatpush.msra.mxu0 1.0
        %237 = vmatpush.msra.mxu0 1.0
        %238 = vmatpush.msra.mxu0 1.0
        %239 = vmatpush.msra.mxu0 1.0
        %240 = vmatpush.msra.mxu0 1.0
        %241 = vmatpush.msra.mxu0 1.0
        %242 = vmatpush.msra.mxu0 1.0
        %243 = vmatpush.msra.mxu0 1.0
        %244 = vmatpush.msra.mxu0 1.0
        %245 = vmatpush.msra.mxu0 1.0
        %246 = vmatpush.msra.mxu0 1.0
        %247 = vmatpush.msra.mxu0 1.0
        %248 = vmatpush.msra.mxu0 1.0
        %249 = vmatpush.msra.mxu0 1.0
        %250 = vmatpush.msra.mxu0 1.0
        %251 = vmatmul.f32.gmra.mxu0 %v219
        %v252 = vpop.f32.mrf.mxu0
        %v253 = vadd.f32 0.0, %v252
        %254 = vmatmul.f32.gmra.mxu0 %v220
        %v255 = vpop.f32.mrf.mxu0
        %v256 = vadd.f32 0.0, %v255
        %257 = vmatmul.f32.gmra.mxu0 %v221
        %v258 = vpop.f32.mrf.mxu0
        %v259 = vadd.f32 0.0, %v258
        %260 = vmatmul.f32.gmra.mxu0 %v222
        %v261 = vpop.f32.mrf.mxu0
        %v262 = vadd.f32 0.0, %v261
        %263 = vmatmul.f32.gmra.mxu0 %v223
        %v264 = vpop.f32.mrf.mxu0
        %v265 = vadd.f32 0.0, %v264
        %266 = vmatmul.f32.gmra.mxu0 %v224
        %v267 = vpop.f32.mrf.mxu0
        %v268 = vadd.f32 0.0, %v267
        %269 = vmatmul.f32.gmra.mxu0 %v225
        %v270 = vpop.f32.mrf.mxu0
        %v271 = vadd.f32 0.0, %v270
        %272 = vmatmul.f32.gmra.mxu0 %v226
        %v273 = vpop.f32.mrf.mxu0
        %v274 = vadd.f32 0.0, %v273
        %275 = vmatmul.f32.gmra.mxu0 %v227
        %v276 = vpop.f32.mrf.mxu0
        %v277 = vadd.f32 0.0, %v276
        %278 = vmatmul.f32.gmra.mxu0 %v228
        %v279 = vpop.f32.mrf.mxu0
        %v280 = vadd.f32 0.0, %v279
        %281 = vmatmul.f32.gmra.mxu0 %v229
        %v282 = vpop.f32.mrf.mxu0
        %v283 = vadd.f32 0.0, %v282
        %284 = vmatmul.f32.gmra.mxu0 %v230
        %v285 = vpop.f32.mrf.mxu0
        %v286 = vadd.f32 0.0, %v285
        %287 = vmatmul.f32.gmra.mxu0 %v231
        %v288 = vpop.f32.mrf.mxu0
        %v289 = vadd.f32 0.0, %v288
        %290 = vmatmul.f32.gmra.mxu0 %v232
        %v291 = vpop.f32.mrf.mxu0
        %v292 = vadd.f32 0.0, %v291
        %293 = vmatmul.f32.gmra.mxu0 %v233
        %v294 = vpop.f32.mrf.mxu0
        %v295 = vadd.f32 0.0, %v294
        %296 = vmatmul.f32.gmra.mxu0 %v234
        %v297 = vpop.f32.mrf.mxu0
        %v298 = vadd.f32 0.0, %v297
        %299 = vdwg.mxu0
        %v300 = vmax.f32 %v253, 1e-24
        %v301 = vmax.f32 %v256, 1e-24
        %v302 = vmax.f32 %v259, 1e-24
        %v303 = vmax.f32 %v262, 1e-24
        %v304 = vmax.f32 %v265, 1e-24
        %v305 = vmax.f32 %v268, 1e-24
        %v306 = vmax.f32 %v271, 1e-24
        %v307 = vmax.f32 %v274, 1e-24
        %v308 = vmax.f32 %v277, 1e-24
        %v309 = vmax.f32 %v280, 1e-24
        %v310 = vmax.f32 %v283, 1e-24
        %v311 = vmax.f32 %v286, 1e-24
        %v312 = vmax.f32 %v289, 1e-24
        %v313 = vmax.f32 %v292, 1e-24
        %v314 = vmax.f32 %v295, 1e-24
        %v315 = vmax.f32 %v298, 1e-24
        %v316 = vrsqrt.pop %v300
        %v317 = vmul.f32 %v316, %v300
        %v318 = vmul.f32 %v317, %v316
        %v319 = vmul.f32 0.5, %v318
        %v320 = vsub.f32 1.5, %v319
        %v321 = vmul.f32 %v316, %v320
        %vm322 = vweird.f32 %v300
        %vm323 = vweird.f32 %v316
        %vm324 = vmor %vm322, %vm323
        %v325 = vsel %vm324, %v316, %v321
        %v326 = vrsqrt.pop %v301
        %v327 = vmul.f32 %v326, %v301
        %v328 = vmul.f32 %v327, %v326
        %v329 = vmul.f32 0.5, %v328
        %v330 = vsub.f32 1.5, %v329
        %v331 = vmul.f32 %v326, %v330
        %vm332 = vweird.f32 %v301
        %vm333 = vweird.f32 %v326
        %vm334 = vmor %vm332, %vm333
        %v335 = vsel %vm334, %v326, %v331
        %v336 = vrsqrt.pop %v302
        %v337 = vmul.f32 %v336, %v302
        %v338 = vmul.f32 %v337, %v336
        %v339 = vmul.f32 0.5, %v338
        %v340 = vsub.f32 1.5, %v339
        %v341 = vmul.f32 %v336, %v340
        %vm342 = vweird.f32 %v302
        %vm343 = vweird.f32 %v336
        %vm344 = vmor %vm342, %vm343
        %v345 = vsel %vm344, %v336, %v341
        %v346 = vrsqrt.pop %v303
        %v347 = vmul.f32 %v346, %v303
        %v348 = vmul.f32 %v347, %v346
        %v349 = vmul.f32 0.5, %v348
        %v350 = vsub.f32 1.5, %v349
        %v351 = vmul.f32 %v346, %v350
        %vm352 = vweird.f32 %v303
        %vm353 = vweird.f32 %v346
        %vm354 = vmor %vm352, %vm353
        %v355 = vsel %vm354, %v346, %v351
        %v356 = vrsqrt.pop %v304
        %v357 = vmul.f32 %v356, %v304
        %v358 = vmul.f32 %v357, %v356
        %v359 = vmul.f32 0.5, %v358
        %v360 = vsub.f32 1.5, %v359
        %v361 = vmul.f32 %v356, %v360
        %vm362 = vweird.f32 %v304
        %vm363 = vweird.f32 %v356
        %vm364 = vmor %vm362, %vm363
        %v365 = vsel %vm364, %v356, %v361
        %v366 = vrsqrt.pop %v305
        %v367 = vmul.f32 %v366, %v305
        %v368 = vmul.f32 %v367, %v366
        %v369 = vmul.f32 0.5, %v368
        %v370 = vsub.f32 1.5, %v369
        %v371 = vmul.f32 %v366, %v370
        %vm372 = vweird.f32 %v305
        %vm373 = vweird.f32 %v366
        %vm374 = vmor %vm372, %vm373
        %v375 = vsel %vm374, %v366, %v371
        %v376 = vrsqrt.pop %v306
        %v377 = vmul.f32 %v376, %v306
        %v378 = vmul.f32 %v377, %v376
        %v379 = vmul.f32 0.5, %v378
        %v380 = vsub.f32 1.5, %v379
        %v381 = vmul.f32 %v376, %v380
        %vm382 = vweird.f32 %v306
        %vm383 = vweird.f32 %v376
        %vm384 = vmor %vm382, %vm383
        %v385 = vsel %vm384, %v376, %v381
        %v386 = vrsqrt.pop %v307
        %v387 = vmul.f32 %v386, %v307
        %v388 = vmul.f32 %v387, %v386
        %v389 = vmul.f32 0.5, %v388
        %v390 = vsub.f32 1.5, %v389
        %v391 = vmul.f32 %v386, %v390
        %vm392 = vweird.f32 %v307
        %vm393 = vweird.f32 %v386
        %vm394 = vmor %vm392, %vm393
        %v395 = vsel %vm394, %v386, %v391
        %v396 = vrsqrt.pop %v308
        %v397 = vmul.f32 %v396, %v308
        %v398 = vmul.f32 %v397, %v396
        %v399 = vmul.f32 0.5, %v398
        %v400 = vsub.f32 1.5, %v399
        %v401 = vmul.f32 %v396, %v400
        %vm402 = vweird.f32 %v308
        %vm403 = vweird.f32 %v396
        %vm404 = vmor %vm402, %vm403
        %v405 = vsel %vm404, %v396, %v401
        %v406 = vrsqrt.pop %v309
        %v407 = vmul.f32 %v406, %v309
        %v408 = vmul.f32 %v407, %v406
        %v409 = vmul.f32 0.5, %v408
        %v410 = vsub.f32 1.5, %v409
        %v411 = vmul.f32 %v406, %v410
        %vm412 = vweird.f32 %v309
        %vm413 = vweird.f32 %v406
        %vm414 = vmor %vm412, %vm413
        %v415 = vsel %vm414, %v406, %v411
        %v416 = vrsqrt.pop %v310
        %v417 = vmul.f32 %v416, %v310
        %v418 = vmul.f32 %v417, %v416
        %v419 = vmul.f32 0.5, %v418
        %v420 = vsub.f32 1.5, %v419
        %v421 = vmul.f32 %v416, %v420
        %vm422 = vweird.f32 %v310
        %vm423 = vweird.f32 %v416
        %vm424 = vmor %vm422, %vm423
        %v425 = vsel %vm424, %v416, %v421
        %v426 = vrsqrt.pop %v311
        %v427 = vmul.f32 %v426, %v311
        %v428 = vmul.f32 %v427, %v426
        %v429 = vmul.f32 0.5, %v428
        %v430 = vsub.f32 1.5, %v429
        %v431 = vmul.f32 %v426, %v430
        %vm432 = vweird.f32 %v311
        %vm433 = vweird.f32 %v426
        %vm434 = vmor %vm432, %vm433
        %v435 = vsel %vm434, %v426, %v431
        %v436 = vrsqrt.pop %v312
        %v437 = vmul.f32 %v436, %v312
        %v438 = vmul.f32 %v437, %v436
        %v439 = vmul.f32 0.5, %v438
        %v440 = vsub.f32 1.5, %v439
        %v441 = vmul.f32 %v436, %v440
        %vm442 = vweird.f32 %v312
        %vm443 = vweird.f32 %v436
        %vm444 = vmor %vm442, %vm443
        %v445 = vsel %vm444, %v436, %v441
        %v446 = vrsqrt.pop %v313
        %v447 = vmul.f32 %v446, %v313
        %v448 = vmul.f32 %v447, %v446
        %v449 = vmul.f32 0.5, %v448
        %v450 = vsub.f32 1.5, %v449
        %v451 = vmul.f32 %v446, %v450
        %vm452 = vweird.f32 %v313
        %vm453 = vweird.f32 %v446
        %vm454 = vmor %vm452, %vm453
        %v455 = vsel %vm454, %v446, %v451
        %v456 = vrsqrt.pop %v314
        %v457 = vmul.f32 %v456, %v314
        %v458 = vmul.f32 %v457, %v456
        %v459 = vmul.f32 0.5, %v458
        %v460 = vsub.f32 1.5, %v459
        %v461 = vmul.f32 %v456, %v460
        %vm462 = vweird.f32 %v314
        %vm463 = vweird.f32 %v456
        %vm464 = vmor %vm462, %vm463
        %v465 = vsel %vm464, %v456, %v461
        %v466 = vrsqrt.pop %v315
        %v467 = vmul.f32 %v466, %v315
        %v468 = vmul.f32 %v467, %v466
        %v469 = vmul.f32 0.5, %v468
        %v470 = vsub.f32 1.5, %v469
        %v471 = vmul.f32 %v466, %v470
        %vm472 = vweird.f32 %v315
        %vm473 = vweird.f32 %v466
        %vm474 = vmor %vm472, %vm473
        %v475 = vsel %vm474, %v466, %v471
        %v476 = vmul.f32 %v172, %v325
        %v477 = vmul.f32 %v175, %v335
        %v478 = vmul.f32 %v178, %v345
        %v479 = vmul.f32 %v181, %v355
        %v480 = vmul.f32 %v184, %v365
        %v481 = vmul.f32 %v187, %v375
        %v482 = vmul.f32 %v190, %v385
        %v483 = vmul.f32 %v193, %v395
        %v484 = vmul.f32 %v196, %v405
        %v485 = vmul.f32 %v199, %v415
        %v486 = vmul.f32 %v202, %v425
        %v487 = vmul.f32 %v205, %v435
        %v488 = vmul.f32 %v208, %v445
        %v489 = vmul.f32 %v211, %v455
        %v490 = vmul.f32 %v214, %v465
        %v491 = vmul.f32 %v217, %v475
        %v492 = vmul.f32 %v325, %v325
        %v493 = vmul.f32 %v335, %v335
        %v494 = vmul.f32 %v345, %v345
        %v495 = vmul.f32 %v355, %v355
        %v496 = vmul.f32 %v365, %v365
        %v497 = vmul.f32 %v375, %v375
        %v498 = vmul.f32 %v385, %v385
        %v499 = vmul.f32 %v395, %v395
        %v500 = vmul.f32 %v405, %v405
        %v501 = vmul.f32 %v415, %v415
        %v502 = vmul.f32 %v425, %v425
        %v503 = vmul.f32 %v435, %v435
        %v504 = vmul.f32 %v445, %v445
        %v505 = vmul.f32 %v455, %v455
        %v506 = vmul.f32 %v465, %v465
        %v507 = vmul.f32 %v475, %v475
        %v508 = vmul.f32 %v253, %v492
        %v509 = vmul.f32 %v256, %v493
        %v510 = vmul.f32 %v259, %v494
        %v511 = vmul.f32 %v262, %v495
        %v512 = vmul.f32 %v265, %v496
        %v513 = vmul.f32 %v268, %v497
        %v514 = vmul.f32 %v271, %v498
        %v515 = vmul.f32 %v274, %v499
        %v516 = vmul.f32 %v277, %v500
        %v517 = vmul.f32 %v280, %v501
        %v518 = vmul.f32 %v283, %v502
        %v519 = vmul.f32 %v286, %v503
        %v520 = vmul.f32 %v289, %v504
        %v521 = vmul.f32 %v292, %v505
        %v522 = vmul.f32 %v295, %v506
        %v523 = vmul.f32 %v298, %v507
        %v524 = vmul.f32 %v476, %v476
        %v525 = vmul.f32 %v477, %v477
        %v526 = vmul.f32 %v478, %v478
        %v527 = vmul.f32 %v479, %v479
        %v528 = vmul.f32 %v480, %v480
        %v529 = vmul.f32 %v481, %v481
        %v530 = vmul.f32 %v482, %v482
        %v531 = vmul.f32 %v483, %v483
        %v532 = vmul.f32 %v484, %v484
        %v533 = vmul.f32 %v485, %v485
        %v534 = vmul.f32 %v486, %v486
        %v535 = vmul.f32 %v487, %v487
        %v536 = vmul.f32 %v488, %v488
        %v537 = vmul.f32 %v489, %v489
        %v538 = vmul.f32 %v490, %v490
        %v539 = vmul.f32 %v491, %v491
        %v540 = vsub.f32 %v524, %v508
        %v541 = vsub.f32 %v525, %v509
        %v542 = vsub.f32 %v526, %v510
        %v543 = vsub.f32 %v527, %v511
        %v544 = vsub.f32 %v528, %v512
        %v545 = vsub.f32 %v529, %v513
        %v546 = vsub.f32 %v530, %v514
        %v547 = vsub.f32 %v531, %v515
        %v548 = vsub.f32 %v532, %v516
        %v549 = vsub.f32 %v533, %v517
        %v550 = vsub.f32 %v534, %v518
        %v551 = vsub.f32 %v535, %v519
        %v552 = vsub.f32 %v536, %v520
        %v553 = vsub.f32 %v537, %v521
        %v554 = vsub.f32 %v538, %v522
        %v555 = vsub.f32 %v539, %v523
        %vm556 = vcmask 7168
        %v557 = vsel %vm556, %v540, 0.0
        %v558 = vsel %vm556, %v541, 0.0
        %v559 = vadd.f32 %v557, %v558
        %v560 = vsel %vm556, %v542, 0.0
        %v561 = vadd.f32 %v559, %v560
        %v562 = vsel %vm556, %v543, 0.0
        %v563 = vadd.f32 %v561, %v562
        %v564 = vsel %vm556, %v544, 0.0
        %v565 = vadd.f32 %v563, %v564
        %v566 = vsel %vm556, %v545, 0.0
        %v567 = vadd.f32 %v565, %v566
        %v568 = vsel %vm556, %v546, 0.0
        %v569 = vadd.f32 %v567, %v568
        %v570 = vsel %vm556, %v547, 0.0
        %v571 = vadd.f32 %v569, %v570
        %v572 = vsel %vm556, %v548, 0.0
        %v573 = vadd.f32 %v571, %v572
        %v574 = vsel %vm556, %v549, 0.0
        %v575 = vadd.f32 %v573, %v574
        %v576 = vsel %vm556, %v550, 0.0
        %v577 = vadd.f32 %v575, %v576
        %v578 = vsel %vm556, %v551, 0.0
        %v579 = vadd.f32 %v577, %v578
        %v580 = vsel %vm556, %v552, 0.0
        %v581 = vadd.f32 %v579, %v580
        %v582 = vsel %vm556, %v553, 0.0
        %v583 = vadd.f32 %v581, %v582
        %v584 = vsel %vm556, %v554, 0.0
        %v585 = vadd.f32 %v583, %v584
        %v586 = vsel %vm556, %v555, 0.0
        %v587 = vadd.f32 %v585, %v586
        %588 = vadd.xlane.f32.xlu0 %v587
        %v589 = vpop.xlane.xlu0 %588
        %v590 = vrot.slane %v589, 4
        %v591 = vadd.f32 %v589, %v590
        %v592 = vrot.slane %v591, 2
        %v593 = vadd.f32 %v591, %v592
        %v594 = vrot.slane %v593, 1
        %v595 = vadd.f32 %v593, %v594
        %s596 = vtos %v595
        %v597 = vlaneseq
        %v598 = vshrl.u32 %v597, 7
        %v599 = vlaneseq
        %v600 = vand.u32 %v599, 127
        %vm601 = vcmp.eq.s32.totalorder %v598, 0
        %vm602 = vcmp.eq.s32.totalorder %v600, 0
        %vm603 = vmand %vm601, %vm602
        %v604 = vsel %vm603, 1, 0
        %v605 = vcvt.s32.f32 %v604
        %v606 = vstv %s596
        %v607 = vmul.f32 %v605, %v606
        %608 = vst [vmem:[%s136] sm:$0xff] %v607
        %s609 = sand.u32 %s52, 1
        %s610 = scalar_lea.sflag [#allocation4], %s609
        %s611 = sand.u32 %s52, 1
        %s612 = smul.addr %s611, 8
        %s613 = scalar_lea.vmem [#allocation5], %s612
        // Predicated region
        $region29: #{tpu_custom_call.1} parent=23 // pred_check
          %p614 = pneg %p62
        $region30: #{tpu_custom_call.1} parent=23 // pred_check_branch
          %616 = sbr.rel (%p614) target = $region32
        $region31: #{tpu_custom_call.1} parent=23 // pred_region
          %618 = vsyncadd %s610, 0
          %s619 = smul.addr %s18, 8
          %s620 = scalar_lea.hbm %s1, %s619
          %s622 = sshll.u32 %s613, 4
          %s623 = int_to_ptr.vmem [resolvable:$true] %s622
          %s624 = sshll.u32 %s620, 4
          %s625 = int_to_ptr.hbm [resolvable:$true] %s624
          %627 = dma.vmem_to_hbm [thread:$0]  %s623, 128, %s625, %s610
        $region32: #{tpu_custom_call.1} parent=23 // pred_fallthru
          _
      $region24: #{tpu_custom_call.1} parent=5 // pred_fallthru
        _
      %p628 = scmp.le.s32.totalorder 2, %s13
      // Predicated region
      $region33: #{tpu_custom_call.1} parent=5 // pred_check
        %p629 = pneg %p628
      $region34: #{tpu_custom_call.1} parent=5 // pred_check_branch
        %631 = sbr.rel (%p629) target = $region36
      $region35: #{tpu_custom_call.1} parent=5 // pred_region
        %s632 = ssub.s32 %s13, 2
        // Predicated region
        $region37: #{tpu_custom_call.1} parent=35 // pred_check
          %p633 = pneg %p68
        $region38: #{tpu_custom_call.1} parent=35 // pred_check_branch
          %635 = sbr.rel (%p633) target = $region40
        $region39: #{tpu_custom_call.1} parent=35 // pred_region
          %s636 = sand.u32 %s53, 1
          %s637 = scalar_lea.sflag [#allocation4], %s636
          %s638 = sand.u32 %s53, 1
          %s639 = smul.addr %s638, 8
          %s640 = scalar_lea.vmem [#allocation5], %s639
          %642 = dma.done %s637, 128
        $region40: #{tpu_custom_call.1} parent=35 // pred_fallthru
          _
      $region36: #{tpu_custom_call.1} parent=5 // pred_fallthru
        _
    $region6: #{tpu_custom_call.1} parent=1 // loop_footer
      %s17 = sadd.s32 1, %s13
    $region7: #{tpu_custom_call.1} parent=1 // loop_footer_branch
      %12 = sbr.rel target = $region3
    $region8: #{tpu_custom_call.1} parent=1 // loop_exit
      _
    %643 = vsyncpa [#allocation3], 1
    %s644 = scalar_lea.sflag [#allocation3], 1
    %645 = vsyncpa %s644, 1
    %646 = vsyncpa [#allocation4], 1
    %s647 = scalar_lea.sflag [#allocation4], 1
    %648 = vsyncpa %s647, 1

</llo_original>
